<compile_context>
chip_gen: v7x
topology: tpu7x:2x2x1
jax: 0.10.0
libtpu: 0.0.40
codegen_flags: <defaults>
</compile_context>

<pallas_src>
import functools
import math

import jax
import jax.numpy as jnp
from jax.experimental import pallas as pl
from jax.experimental.pallas import tpu as pltpu

LANES = 512                           # slab width (multiple of 128 -> lane-dense stores)
TARGET_TILE_BYTES = 2 * 1024 * 1024   # ~2 MiB per DMA buffer (roofline plateau)

_INV_SQRT2 = 1.0 / math.sqrt(2.0)
_TANH_C0 = 0.7978845608028654          # sqrt(2/pi)
_TANH_C1 = 0.044715


def _segelu_kernel(gamma_ref, x_ref, o_ref, *, approximate: bool):
    """Elementwise SEGELU on one (block_rows, LANES) tile. Compute in f32."""
    x = x_ref[...].astype(jnp.float32)
    gamma = gamma_ref[0]                       # SMEM scalar, read once
    ax = jnp.abs(x)                            # reused for erf AND exp(-|x|)

    if approximate:
        # tanh-GELU (PyTorch approximate='tanh'): 1 EUP tanh + ~7 VPU ops.
        inner = _TANH_C0 * (x + _TANH_C1 * x * x * x)
        gelu = 0.5 * x * (1.0 + jnp.tanh(inner))
    else:
        # Exact-form gelu via A&S 7.1.26 erf (|abs err| ~1.5e-7), sign-free:
        #   x * erf(x/sqrt2) == |x| * erf_abs(|x|/sqrt2)
        az = ax * _INV_SQRT2
        d = 1.0 + 0.3275911 * az
        t = pl.reciprocal(d, approx=True)      # EUP slot (free-ish)
        t = t * (2.0 - d * t)                  # one Newton step -> f32 accuracy
        poly = t * (0.254829592
               + t * (-0.284496736
               + t * (1.421413741
               + t * (-1.453152027
               + t * 1.061405429))))
        erf_abs = 1.0 - poly * jnp.exp(-az * az)
        gelu = 0.5 * (x + ax * erf_abs)

    y = gelu * (1.0 + gamma * jnp.exp(-ax))
    o_ref[...] = y.astype(o_ref.dtype)


def _segelu_jnp(x, gamma, approximate: bool):
    """Plain-jnp SEGELU for the tiny (<LANES) tail; XLA fuses it."""
    xf = x.astype(jnp.float32)
    if approximate:
        inner = _TANH_C0 * (xf + _TANH_C1 * xf * xf * xf)
        gelu = 0.5 * xf * (1.0 + jnp.tanh(inner))
    else:
        gelu = 0.5 * xf * (1.0 + jax.scipy.special.erf(xf * _INV_SQRT2))
    return (gelu * (1.0 + gamma * jnp.exp(-jnp.abs(xf)))).astype(x.dtype)


def _choose_block_rows(n_rows: int, max_rows: int) -> int:
    # Tiny input: one full-extent block (block dim == full dim is always legal).
    if n_rows <= 8:
        return n_rows
    # Multiple-of-8 row blocks capped at ~2 MiB, with at least 2 grid blocks so
    # the "parallel" axis can shard across v7x's two TensorCores.
    two_way = ((n_rows + 1) // 2 + 7) // 8 * 8
    return max(8, min(max_rows, two_way))


def segelu(x: jax.Array, gamma=0.1, *, approximate: bool = False) -> jax.Array:
    """SEGELU: gelu(x) * (1 + gamma * exp(-|x|)), elementwise, any shape/float dtype."""
    orig_shape = x.shape
    orig_dtype = x.dtype

    flat = x.reshape(-1)
    n = flat.shape[0]
    if n == 0:
        return x

    # Runtime scalar (works for Python floats and traced/learnable gammas).
    gamma_arr = jnp.asarray(gamma, dtype=jnp.float32).reshape(1)

    # Kernel runs on the LANES-aligned prefix; the <LANES-element tail (if any)
    # is computed with fused jnp instead of padding + slicing the whole array.
    n_main = (n // LANES) * LANES
    if n_main == 0:
        out = _segelu_jnp(flat, gamma_arr[0], approximate)
        return out.reshape(orig_shape)

    main = flat if n_main == n else flat[:n_main]
    x2d = main.reshape(n_main // LANES, LANES)
    n_rows = x2d.shape[0]

    itemsize = jnp.dtype(orig_dtype).itemsize
    max_rows = max(8, TARGET_TILE_BYTES // (LANES * itemsize))
    block_rows = _choose_block_rows(n_rows, max_rows)
    grid = (pl.cdiv(n_rows, block_rows),)

    kernel = functools.partial(_segelu_kernel, approximate=approximate)

    out2d = pl.pallas_call(
        kernel,
        out_shape=jax.ShapeDtypeStruct((n_rows, LANES), orig_dtype),
        grid_spec=pltpu.PrefetchScalarGridSpec(
            num_scalar_prefetch=0,
            grid=grid,
            in_specs=[
                pl.BlockSpec(memory_space=pltpu.MemorySpace.SMEM),   # gamma scalar
                pl.BlockSpec((block_rows, LANES), lambda i: (i, 0)),  # x tile
            ],
            out_specs=pl.BlockSpec((block_rows, LANES), lambda i: (i, 0)),
        ),
        compiler_params=pltpu.CompilerParams(
            dimension_semantics=("parallel",),
            vmem_limit_bytes=32 * 1024 * 1024,
        ),
    )(gamma_arr, x2d)

    out_main = out2d.reshape(-1)
    if n_main == n:
        return out_main.reshape(orig_shape)

    tail_out = _segelu_jnp(flat[n_main:], gamma_arr[0], approximate)
    return jnp.concatenate([out_main, tail_out]).reshape(orig_shape)


def _segelu_ref(x, gamma=0.1):
    xf = x.astype(jnp.float32)
    gelu = 0.5 * xf * (1.0 + jax.scipy.special.erf(xf * _INV_SQRT2))
    return (gelu * (1.0 + gamma * jnp.exp(-jnp.abs(xf)))).astype(x.dtype)


if __name__ == "__main__":
    key = jax.random.PRNGKey(0)
    gamma = 0.1

    # Main check: NCHW f32 (2, 4, 16, 16); 2048 elems -> aligned, copy-free path.
    x = jax.random.normal(key, (2, 4, 16, 16), dtype=jnp.float32)
    y = jax.block_until_ready(segelu(x, gamma=gamma))
    y_ref = _segelu_ref(x, gamma)
    assert y.shape == x.shape and y.dtype == x.dtype
    assert jnp.allclose(y, y_ref, atol=1e-5, rtol=1e-5), \
        float(jnp.max(jnp.abs(y - y_ref)))

    # Unaligned shape: aligned-prefix kernel + jnp tail (1581 = 3*512 + 45).
    k1, k2 = jax.random.split(key)
    x_odd = jax.random.normal(k1, (3, 17, 31), dtype=jnp.float32)
    y_odd = jax.block_until_ready(segelu(x_odd, gamma=gamma))
    assert y_odd.shape == x_odd.shape
    assert jnp.allclose(y_odd, _segelu_ref(x_odd, gamma), atol=1e-5, rtol=1e-5)

    # Larger shape: multi-block grid with a partial last block
    # (12288 elems -> 24 rows of 512, block_rows=16 -> grid=2).
    x_big = jax.random.normal(k2, (12, 32, 32), dtype=jnp.float32)
    y_big = jax.block_until_ready(segelu(x_big, gamma=gamma))
    assert jnp.allclose(y_big, _segelu_ref(x_big, gamma), atol=1e-5, rtol=1e-5)

    # bf16 path: f32 compute inside the kernel, cast on store.
    x_bf16 = jax.random.normal(key, (2, 4, 16, 16), dtype=jnp.bfloat16)
    y_bf16 = jax.block_until_ready(segelu(x_bf16, gamma=gamma))
    assert y_bf16.dtype == jnp.bfloat16
    assert jnp.allclose(y_bf16.astype(jnp.float32),
                        _segelu_ref(x_bf16, gamma).astype(jnp.float32),
                        atol=1e-2, rtol=2e-2)

    # tanh-GELU fast path (looser tolerance: ~1e-3 deviation vs exact gelu).
    y_tanh = jax.block_until_ready(segelu(x, gamma=gamma, approximate=True))
    assert jnp.allclose(y_tanh, y_ref, atol=5e-3, rtol=5e-3)

    print("KERNEL_OK")
</pallas_src>

<mosaic_0001>
module attributes {stable_mosaic.version = 11 : i64} {
  func.func @_segelu_kernel(%arg0: i32, %arg1: memref<1xf32, #tpu.memory_space<smem>>, %arg2: memref<4x512xf32, #tpu.memory_space<vmem>>, %arg3: memref<4x512xf32, #tpu.memory_space<vmem>>) attributes {dimension_semantics = [#tpu.dimension_semantics<parallel>], iteration_bounds = array<i64: 1>, scalar_prefetch = 0 : i64, scratch_operands = 0 : i64, tpu.core_type = #tpu.core_type<tc>, window_params = [{transform_indices = @transform_0, window_bounds = array<i64: 1>}, {transform_indices = @transform_1, window_bounds = array<i64: 4, 512>}, {transform_indices = @transform_2, window_bounds = array<i64: 4, 512>}]} {
    %c0 = arith.constant 0 : index
    %c0_0 = arith.constant 0 : index
    %0 = vector.load %arg2[%c0, %c0_0] : memref<4x512xf32, #tpu.memory_space<vmem>>, vector<4x512xf32>
    %c0_1 = arith.constant 0 : index
    %1 = memref.load %arg1[%c0_1] : memref<1xf32, #tpu.memory_space<smem>>
    %2 = math.absf %0 : vector<4x512xf32>
    %cst = arith.constant 0.707106769 : f32
    %3 = vector.broadcast %cst : f32 to vector<4x512xf32>
    %4 = arith.mulf %2, %3 : vector<4x512xf32>
    %cst_2 = arith.constant 0.327591091 : f32
    %5 = vector.broadcast %cst_2 : f32 to vector<4x512xf32>
    %6 = arith.mulf %5, %4 : vector<4x512xf32>
    %cst_3 = arith.constant 1.000000e+00 : f32
    %7 = vector.broadcast %cst_3 : f32 to vector<4x512xf32>
    %8 = arith.addf %7, %6 : vector<4x512xf32>
    %9 = tpu.reciprocal %8 {approx = true} : vector<4x512xf32> -> vector<4x512xf32>
    %10 = arith.mulf %8, %9 : vector<4x512xf32>
    %cst_4 = arith.constant 2.000000e+00 : f32
    %11 = vector.broadcast %cst_4 : f32 to vector<4x512xf32>
    %12 = arith.subf %11, %10 : vector<4x512xf32>
    %13 = arith.mulf %9, %12 : vector<4x512xf32>
    %cst_5 = arith.constant 1.06140542 : f32
    %14 = vector.broadcast %cst_5 : f32 to vector<4x512xf32>
    %15 = arith.mulf %13, %14 : vector<4x512xf32>
    %cst_6 = arith.constant -1.45315206 : f32
    %16 = vector.broadcast %cst_6 : f32 to vector<4x512xf32>
    %17 = arith.addf %16, %15 : vector<4x512xf32>
    %18 = arith.mulf %13, %17 : vector<4x512xf32>
    %cst_7 = arith.constant 1.42141378 : f32
    %19 = vector.broadcast %cst_7 : f32 to vector<4x512xf32>
    %20 = arith.addf %19, %18 : vector<4x512xf32>
    %21 = arith.mulf %13, %20 : vector<4x512xf32>
    %cst_8 = arith.constant -0.284496725 : f32
    %22 = vector.broadcast %cst_8 : f32 to vector<4x512xf32>
    %23 = arith.addf %22, %21 : vector<4x512xf32>
    %24 = arith.mulf %13, %23 : vector<4x512xf32>
    %cst_9 = arith.constant 0.254829586 : f32
    %25 = vector.broadcast %cst_9 : f32 to vector<4x512xf32>
    %26 = arith.addf %25, %24 : vector<4x512xf32>
    %27 = arith.mulf %13, %26 : vector<4x512xf32>
    %cst_10 = arith.constant 0.000000e+00 : f32
    %28 = vector.broadcast %cst_10 : f32 to vector<4x512xf32>
    %29 = arith.subf %28, %4 : vector<4x512xf32>
    %30 = arith.mulf %29, %4 : vector<4x512xf32>
    %31 = math.exp %30 : vector<4x512xf32>
    %32 = arith.mulf %27, %31 : vector<4x512xf32>
    %cst_11 = arith.constant 1.000000e+00 : f32
    %33 = vector.broadcast %cst_11 : f32 to vector<4x512xf32>
    %34 = arith.subf %33, %32 : vector<4x512xf32>
    %35 = arith.mulf %2, %34 : vector<4x512xf32>
    %36 = arith.addf %0, %35 : vector<4x512xf32>
    %cst_12 = arith.constant 5.000000e-01 : f32
    %37 = vector.broadcast %cst_12 : f32 to vector<4x512xf32>
    %38 = arith.mulf %37, %36 : vector<4x512xf32>
    %cst_13 = arith.constant 0.000000e+00 : f32
    %39 = vector.broadcast %cst_13 : f32 to vector<4x512xf32>
    %40 = arith.subf %39, %2 : vector<4x512xf32>
    %41 = math.exp %40 : vector<4x512xf32>
    %42 = vector.broadcast %1 : f32 to vector<4x512xf32>
    %43 = arith.mulf %42, %41 : vector<4x512xf32>
    %cst_14 = arith.constant 1.000000e+00 : f32
    %44 = vector.broadcast %cst_14 : f32 to vector<4x512xf32>
    %45 = arith.addf %44, %43 : vector<4x512xf32>
    %46 = arith.mulf %38, %45 : vector<4x512xf32>
    %c0_15 = arith.constant 0 : index
    %c0_16 = arith.constant 0 : index
    %47 = vector.load %arg3[%c0_15, %c0_16] : memref<4x512xf32, #tpu.memory_space<vmem>>, vector<4x512xf32>
    tpu.vector_store %arg3[%c0_15, %c0_16], %46 {strides = array<i32>} : memref<4x512xf32, #tpu.memory_space<vmem>>, vector<4x512xf32>,
    return
  }
  func.func @transform_0(%arg0: i32) -> i32 {
    %c0_i32 = arith.constant 0 : i32
    %c0_i32_0 = arith.constant 0 : i32
    return %c0_i32 : i32
  }
  func.func @transform_1(%arg0: i32) -> (i32, i32) {
    %c0_i32 = arith.constant 0 : i32
    %c0_i32_0 = arith.constant 0 : i32
    return %arg0, %c0_i32 : i32, i32
  }
  func.func @transform_2(%arg0: i32) -> (i32, i32) {
    %c0_i32 = arith.constant 0 : i32
    %c0_i32_0 = arith.constant 0 : i32
    return %arg0, %c0_i32 : i32, i32
  }
}

</mosaic_0001>

<llo_original>
// kernel: tpu_custom_call.1
$region0: #{tpu_custom_call.1}
  #allocation0 [shape = 'u32[]', space=smem, size = 0x4, offset = 0x4, fixed_abs, tag = 'smem constant byte address 0x4 - core index']
  #allocation1 [shape = 'u32[144,128]{1,0:T(1,128)}', space=vmem, size = 0x12000, scoped, tag = 'internal scratch']
  #allocation2 [shape = 'f32[1]{0:T(128)S(6)}', space=smem, size = 0x200, scoped, tag = 'scoped memory for tpu_custom_call.1']
  %s0 = inlined_call_operand.<no memory space> [shape: f32[1], index: 0, kind: input, shape index: {}]
  %s1 = inlined_call_operand.hbm [shape: f32[4,512], index: 1, kind: input, shape index: {}]
  %s2 = inlined_call_operand.hbm [shape: f32[4,512], index: 2, kind: output, shape index: {}]
  %s3 = sld [smem:[#allocation0]]
  $region22: #{tpu_custom_call.1} parent=0
    _
  %s5 = ssub.s32 1, %s3
  %s6 = scalar_select 0, %s5, %s3
  %7 = sst [smem:[#allocation2]] %s0
  $region1: #{tpu_custom_call.1} parent=0
    #allocation3 [shape = 'u8[8192]{0}', space=vmem, size = 0x2000, scoped, tag = 'input window, operand 1, single buffered']
    #allocation4 [shape = 's32[1]{0}', space=sflag, size = 0x4, scoped, tag = 'scoped memory for tpu_custom_call.1']
    #allocation5 [shape = 's32[1]{0}', space=sflag, size = 0x4, scoped, tag = 'scoped memory for tpu_custom_call.1']
    #allocation6 [shape = 'u8[8192]{0}', space=vmem, size = 0x2000, scoped, tag = 'output window, operand 0, single buffered']
    %8 = vsyncpa [#allocation4], 0
    %9 = vsyncpa [#allocation5], 0
    // Predicated region
    $region2: #{tpu_custom_call.1} parent=1 // pred_check
      _
    $region3: #{tpu_custom_call.1} parent=1 // pred_check_branch
      %11 = sbr.rel (0) target = $region5
    $region4: #{tpu_custom_call.1} parent=1 // pred_region
      _
    $region5: #{tpu_custom_call.1} parent=1 // pred_fallthru
      _
    // Predicated region
    $region6: #{tpu_custom_call.1} parent=1 // pred_check
      _
    $region7: #{tpu_custom_call.1} parent=1 // pred_check_branch
      %13 = sbr.rel (0) target = $region9
    $region8: #{tpu_custom_call.1} parent=1 // pred_region
      %s15 = ssub.s32 256, 256
      %16 = vsyncadd [#allocation4], %s15
      %s18 = sshll.u32 [#allocation3], 4
      %s19 = int_to_ptr.vmem [resolvable:$true] %s18
      %21 = dma.hbm_to_vmem [thread:$0]  %s1, 256, %s19, [#allocation4]
    $region9: #{tpu_custom_call.1} parent=1 // pred_fallthru
      _
    // Predicated region
    $region10: #{tpu_custom_call.1} parent=1 // pred_check
      _
    $region11: #{tpu_custom_call.1} parent=1 // pred_check_branch
      %23 = sbr.rel (0) target = $region13
    $region12: #{tpu_custom_call.1} parent=1 // pred_region
      %24 = dma.done [#allocation4], 256
    $region13: #{tpu_custom_call.1} parent=1 // pred_fallthru
      _
    %v25 = vld [vmem:[#allocation3] sm:$0xff]
    %v26 = vld [vmem:[#allocation3 + $0x8] sm:$0xff]
    %s27 = sld [smem:[#allocation2]]
    %v28 = vand.u32 2147483647, %v25
    %v29 = vand.u32 2147483647, %v26
    %v30 = vmul.f32 %v28, 0.70710677
    %v31 = vmul.f32 %v29, 0.70710677
    %v32 = vmul.f32 %v30, 0.3275911
    %v33 = vmul.f32 %v31, 0.3275911
    %v34 = vadd.f32 %v32, 1.0
    %v35 = vadd.f32 %v33, 1.0
    %v36 = vrcp.pop %v34
    %v37 = vrcp.pop %v35
    %v38 = vmul.f32 %v34, %v36
    %v39 = vmul.f32 %v35, %v37
    %v40 = vsub.f32 2.0, %v38
    %v41 = vsub.f32 2.0, %v39
    %v42 = vmul.f32 %v36, %v40
    %v43 = vmul.f32 %v37, %v41
    %v44 = vmul.f32 %v42, 1.0614054
    %v45 = vmul.f32 %v43, 1.0614054
    %v46 = vadd.f32 %v44, -1.4531521
    %v47 = vadd.f32 %v45, -1.4531521
    %v48 = vmul.f32 %v42, %v46
    %v49 = vmul.f32 %v43, %v47
    %v50 = vadd.f32 %v48, 1.4214138
    %v51 = vadd.f32 %v49, 1.4214138
    %v52 = vmul.f32 %v42, %v50
    %v53 = vmul.f32 %v43, %v51
    %v54 = vadd.f32 %v52, -0.28449672
    %v55 = vadd.f32 %v53, -0.28449672
    %v56 = vmul.f32 %v42, %v54
    %v57 = vmul.f32 %v43, %v55
    %v58 = vadd.f32 %v56, 0.2548296
    %v59 = vadd.f32 %v57, 0.2548296
    %v60 = vmul.f32 %v42, %v58
    %v61 = vmul.f32 %v43, %v59
    %v62 = vsub.f32 0.0, %v30
    %v63 = vsub.f32 0.0, %v31
    %v64 = vmul.f32 %v62, %v30
    %v65 = vmul.f32 %v63, %v31
    %v66 = vmul.f32 %v64, 1.442695
    %v67 = vpow.pop %v66
    %v68 = vmul.f32 %v65, 1.442695
    %v69 = vpow.pop %v68
    %v70 = vmul.f32 %v60, %v67
    %v71 = vmul.f32 %v61, %v69
    %v72 = vsub.f32 1.0, %v70
    %v73 = vsub.f32 1.0, %v71
    %v74 = vmul.f32 %v28, %v72
    %v75 = vmul.f32 %v29, %v73
    %v76 = vadd.f32 %v25, %v74
    %v77 = vadd.f32 %v26, %v75
    %v78 = vmul.f32 %v76, 0.5
    %v79 = vmul.f32 %v77, 0.5
    %v80 = vsub.f32 0.0, %v28
    %v81 = vsub.f32 0.0, %v29
    %v82 = vmul.f32 %v80, 1.442695
    %v83 = vpow.pop %v82
    %v84 = vmul.f32 %v81, 1.442695
    %v85 = vpow.pop %v84
    %v86 = vstv %s27
    %v87 = vmul.f32 %v86, %v83
    %v88 = vmul.f32 %v86, %v85
    %v89 = vadd.f32 %v87, 1.0
    %v90 = vadd.f32 %v88, 1.0
    %v91 = vmul.f32 %v78, %v89
    %v92 = vmul.f32 %v79, %v90
    %93 = vst [vmem:[#allocation6] sm:$0xff] %v91
    %94 = vst [vmem:[#allocation6 + $0x8] sm:$0xff] %v92
    // Predicated region
    $region14: #{tpu_custom_call.1} parent=1 // pred_check
      _
    $region15: #{tpu_custom_call.1} parent=1 // pred_check_branch
      %96 = sbr.rel (0) target = $region17
    $region16: #{tpu_custom_call.1} parent=1 // pred_region
      %s98 = ssub.s32 256, 256
      %99 = vsyncadd [#allocation5], %s98
      %s101 = sshll.u32 [#allocation6], 4
      %s102 = int_to_ptr.vmem [resolvable:$true] %s101
      %104 = dma.vmem_to_hbm [thread:$0]  %s102, 256, %s2, [#allocation5]
    $region17: #{tpu_custom_call.1} parent=1 // pred_fallthru
      _
    // Predicated region
    $region18: #{tpu_custom_call.1} parent=1 // pred_check
      _
    $region19: #{tpu_custom_call.1} parent=1 // pred_check_branch
      %106 = sbr.rel (0) target = $region21
    $region20: #{tpu_custom_call.1} parent=1 // pred_region
      %107 = dma.done [#allocation5], 256
    $region21: #{tpu_custom_call.1} parent=1 // pred_fallthru
      _
    %108 = vsyncpa [#allocation4], 1
    %109 = vsyncpa [#allocation5], 1

</llo_original>
